<compile_context>
chip_gen: v6e
topology: v6e:2x2x1
jax: 0.10.0
libtpu: 0.0.40
codegen_flags: <defaults>
</compile_context>

<pallas_src>
import jax
import jax.numpy as jnp
from jax import lax
from jax.experimental import pallas as pl
from jax.experimental.pallas import tpu as pltpu

_LANE = 128
_SUBLANE = 8


def _round_up(x: int, m: int) -> int:
    return ((x + m - 1) // m) * m


def _pad2d(a, rows: int, cols: int, dtype):
    """Cast to dtype and zero-pad a 2-D array up to (rows, cols)."""
    a = a.astype(dtype)
    pr, pc = rows - a.shape[0], cols - a.shape[1]
    if pr or pc:
        a = jnp.pad(a, ((0, pr), (0, pc)))
    return a


def _lora_kernel(x_ref, w_ref, bias_ref, xa_ref, lat_ref, o_ref, acc_ref):
    """One (tm, tn) output tile, accumulated over the innermost K grid axis.

    x_ref    : (tm, tk)            activations tile
    w_ref    : (tn, tk)            weight tile (untransposed; contract last axes)
    bias_ref : (1,  tn)  f32       bias tile
    xa_ref   : (tm, rank_pad)      precomputed  rank * (x @ lora_B^T)  tile
    lat_ref  : (rank_pad, tn)      lora_A^T tile (pre-transposed in wrapper)
    o_ref    : (tm, tn)            output tile
    acc_ref  : (tm, tn)  f32       base-matmul accumulator (VMEM scratch)
    """
    k = pl.program_id(2)

    @pl.when(k == 0)
    def _():
        acc_ref[...] = jnp.zeros_like(acc_ref)

    # Base path: contract x (last axis) with W (last axis) == x @ W^T on the
    # MXU with f32 accumulation; no in-kernel tile transpose.
    acc_ref[...] += lax.dot_general(
        x_ref[...], w_ref[...],
        dimension_numbers=(((1,), (1,)), ((), ())),
        preferred_element_type=jnp.float32)

    @pl.when(k == pl.num_programs(2) - 1)
    def _():
        # Epilogue, once per output tile: rank-r LoRA up-projection
        # (xa already carries the rank scale), bias add, writeback.
        lora = jnp.dot(xa_ref[...], lat_ref[...],
                       preferred_element_type=jnp.float32)
        o_ref[...] = (acc_ref[...] + bias_ref[...] + lora).astype(o_ref.dtype)


def simple_lora_forward(x, weight, bias, lora_A, lora_B, rank, *,
                        compute_dtype=jnp.bfloat16,
                        tm=512, tn=1024, tk=1024):
    """x: (B, d_in); weight: (d_out, d_in); bias: (d_out,);
    lora_A: (d_out, rank); lora_B: (rank, d_in).

    Returns x @ W^T + bias + rank * (x @ lora_B^T) @ lora_A^T  (== the PyTorch
    module forward, since scaling = 1/rank and the module divides by scaling).
    """
    M, K = x.shape
    N, Kw = weight.shape
    r = lora_A.shape[1]
    assert Kw == K and lora_B.shape == (r, K) and lora_A.shape == (N, r)

    out_dtype = x.dtype

    # (8,128)-aligned tiles, capped at the padded problem size.  Any tile that
    # is smaller than the default exactly equals its padded array dim, so the
    # (8, 128) BlockSpec rule always holds.
    tm = min(tm, _round_up(M, _SUBLANE))
    tn = min(tn, _round_up(N, _LANE))
    tk = min(tk, _round_up(K, _LANE))
    Mp, Np, Kp = _round_up(M, tm), _round_up(N, tn), _round_up(K, tk)
    rp = _round_up(r, _LANE)                    # pad rank to a full lane granule

    # ---- LoRA stage 1, hoisted out of the grid: xa = rank * (x @ lora_B^T).
    # Tiny skinny (M x r) matmul; keeping it in the kernel's k-loop would
    # redundantly recompute it for every N tile and re-fetch lora_B each step.
    xa = jnp.dot(x.astype(jnp.float32), lora_B.astype(jnp.float32).T,
                 preferred_element_type=jnp.float32) * float(rank)

    # ---- Parameter / activation prep (cache the weight-side pieces in real use).
    xp = _pad2d(x, Mp, Kp, compute_dtype)
    wp = _pad2d(weight, Np, Kp, compute_dtype)
    bp = _pad2d(bias.reshape(1, -1), 1, Np, jnp.float32)
    xap = _pad2d(xa, Mp, rp, compute_dtype)
    latp = _pad2d(lora_A.T, rp, Np, compute_dtype)   # pre-transposed A: (rp, Np)

    grid = (Mp // tm, Np // tn, Kp // tk)

    cdt = jnp.dtype(compute_dtype).itemsize
    odt = jnp.dtype(out_dtype).itemsize
    cost = pl.CostEstimate(
        flops=2 * Mp * Kp * Np + 2 * Mp * rp * Np,
        transcendentals=0,
        bytes_accessed=((Mp * Kp * (Np // tn) + Np * Kp + Mp * rp + rp * Np) * cdt
                        + Np * 4 + Mp * Np * odt),
    )

    # Size the VMEM limit to actual usage (double-buffered inputs/outputs plus
    # the f32 accumulator) with ~50% headroom; cap well below v7x's 64 MiB.
    vmem_bytes = int(
        2 * (tm * tk + tn * tk + tm * rp + rp * tn) * cdt   # double-buffered inputs
        + 2 * 1 * tn * 4                                    # bias (f32)
        + 2 * tm * tn * odt                                 # output double buffer
        + tm * tn * 4)                                      # f32 accumulator
    vmem_limit = min(max(int(vmem_bytes * 1.5), 4 * 1024 * 1024), 48 * 1024 * 1024)

    out = pl.pallas_call(
        _lora_kernel,
        out_shape=jax.ShapeDtypeStruct((Mp, Np), out_dtype),
        grid_spec=pltpu.PrefetchScalarGridSpec(
            num_scalar_prefetch=0,
            grid=grid,
            in_specs=[
                pl.BlockSpec((tm, tk), lambda i, j, k: (i, k)),   # x
                pl.BlockSpec((tn, tk), lambda i, j, k: (j, k)),   # weight (N, K)
                pl.BlockSpec((1, tn), lambda i, j, k: (0, j)),    # bias (f32)
                pl.BlockSpec((tm, rp), lambda i, j, k: (i, 0)),   # xa = rank * x @ B^T
                pl.BlockSpec((rp, tn), lambda i, j, k: (0, j)),   # lora_A^T
            ],
            out_specs=pl.BlockSpec((tm, tn), lambda i, j, k: (i, j)),
            scratch_shapes=[
                pltpu.VMEM((tm, tn), jnp.float32),   # base-matmul accumulator
            ],
        ),
        compiler_params=pltpu.CompilerParams(
            dimension_semantics=("parallel", "parallel", "arbitrary"),
            vmem_limit_bytes=vmem_limit,
        ),
        cost_estimate=cost,
    )(xp, wp, bp, xap, latp)

    return out[:M, :N]


if __name__ == "__main__":
    key = jax.random.PRNGKey(0)
    k_x, k_w, k_b, k_a, k_lb = jax.random.split(key, 5)

    batch, d_in, d_out, rank = 8, 32, 32, 4

    x = jax.random.normal(k_x, (batch, d_in), dtype=jnp.float32)
    weight = jax.random.normal(k_w, (d_out, d_in), dtype=jnp.float32) * 0.1
    bias = jax.random.normal(k_b, (d_out,), dtype=jnp.float32) * 0.1
    # lora_A init: randn * 1/sqrt(rank)  (matches the module __init__)
    lora_A = jax.random.normal(k_a, (d_out, rank), dtype=jnp.float32) / jnp.sqrt(rank)
    # The module inits lora_B to zeros; use small random values here so the
    # LoRA path is actually exercised numerically (forward semantics unchanged).
    lora_B = jax.random.normal(k_lb, (rank, d_in), dtype=jnp.float32) * 0.05

    # Pure-JAX reference of the PyTorch forward (scaling = 1/rank, divided out).
    scaling = 1.0 / rank
    ref = x @ weight.T + bias + (x @ lora_B.T @ lora_A.T) / scaling

    # f32 path (tight tolerance vs. the f32 reference).
    out_f32 = jax.block_until_ready(
        simple_lora_forward(x, weight, bias, lora_A, lora_B, rank,
                            compute_dtype=jnp.float32))
    assert out_f32.shape == (batch, d_out)
    assert jnp.allclose(out_f32, ref, atol=1e-4, rtol=1e-4)

    # Default bf16 MXU fast path (f32 accumulation), looser tolerance.
    out_bf16 = jax.block_until_ready(
        simple_lora_forward(x, weight, bias, lora_A, lora_B, rank))
    assert out_bf16.shape == (batch, d_out)
    assert jnp.allclose(out_bf16, ref, atol=1e-1, rtol=1e-1)

    print("KERNEL_OK")
</pallas_src>

<mosaic_0001>
module attributes {stable_mosaic.version = 11 : i64} {
  func.func @_lora_kernel(%arg0: i32, %arg1: i32, %arg2: i32, %arg3: memref<8x128xf32, #tpu.memory_space<vmem>>, %arg4: memref<128x128xf32, #tpu.memory_space<vmem>>, %arg5: memref<1x128xf32, #tpu.memory_space<vmem>>, %arg6: memref<8x128xf32, #tpu.memory_space<vmem>>, %arg7: memref<128x128xf32, #tpu.memory_space<vmem>>, %arg8: memref<8x128xf32, #tpu.memory_space<vmem>>, %arg9: memref<8x128xf32, #tpu.memory_space<vmem>>) attributes {dimension_semantics = [#tpu.dimension_semantics<parallel>, #tpu.dimension_semantics<parallel>, #tpu.dimension_semantics<arbitrary>], iteration_bounds = array<i64: 1, 1, 1>, scalar_prefetch = 0 : i64, scratch_operands = 1 : i64, tpu.core_type = #tpu.core_type<tc>, window_params = [{transform_indices = @transform_0, window_bounds = array<i64: 8, 128>}, {transform_indices = @transform_1, window_bounds = array<i64: 128, 128>}, {transform_indices = @transform_2, window_bounds = array<i64: 1, 128>}, {transform_indices = @transform_3, window_bounds = array<i64: 8, 128>}, {transform_indices = @transform_4, window_bounds = array<i64: 128, 128>}, {transform_indices = @transform_5, window_bounds = array<i64: 8, 128>}]} {
    %c0_i32 = arith.constant 0 : i32
    %0 = arith.cmpi eq, %arg2, %c0_i32 : i32
    %1 = arith.extui %0 : i1 to i32
    %c0_i32_0 = arith.constant 0 : i32
    %2 = arith.cmpi ne, %1, %c0_i32_0 : i32
    scf.if %2 {
      %cst_10 = arith.constant 0.000000e+00 : f32
      %12 = vector.broadcast %cst_10 : f32 to vector<8x128xf32>
      %c0_11 = arith.constant 0 : index
      %c0_12 = arith.constant 0 : index
      %13 = vector.load %arg9[%c0_11, %c0_12] : memref<8x128xf32, #tpu.memory_space<vmem>>, vector<8x128xf32>
      tpu.vector_store %arg9[%c0_11, %c0_12], %12 {strides = array<i32>} : memref<8x128xf32, #tpu.memory_space<vmem>>, vector<8x128xf32>,
    } else {
    }
    %c0 = arith.constant 0 : index
    %c0_1 = arith.constant 0 : index
    %3 = vector.load %arg9[%c0, %c0_1] : memref<8x128xf32, #tpu.memory_space<vmem>>, vector<8x128xf32>
    %c0_2 = arith.constant 0 : index
    %c0_3 = arith.constant 0 : index
    %4 = vector.load %arg3[%c0_2, %c0_3] : memref<8x128xf32, #tpu.memory_space<vmem>>, vector<8x128xf32>
    %c0_4 = arith.constant 0 : index
    %c0_5 = arith.constant 0 : index
    %5 = vector.load %arg4[%c0_4, %c0_5] : memref<128x128xf32, #tpu.memory_space<vmem>>, vector<128x128xf32>
    %cst = arith.constant dense<0.000000e+00> : vector<8x128xf32>
    %6 = tpu.matmul %4, %5, %cst {dimension_numbers = #tpu.dot_dimension_numbers<[1], [1], [0], [0], [0, 0, 1, 0], [], []>} : vector<8x128xf32>, vector<128x128xf32>, vector<8x128xf32> -> vector<8x128xf32>
    %7 = arith.addf %3, %6 : vector<8x128xf32>
    %c0_6 = arith.constant 0 : index
    %c0_7 = arith.constant 0 : index
    %8 = vector.load %arg9[%c0_6, %c0_7] : memref<8x128xf32, #tpu.memory_space<vmem>>, vector<8x128xf32>
    tpu.vector_store %arg9[%c0_6, %c0_7], %7 {strides = array<i32>} : memref<8x128xf32, #tpu.memory_space<vmem>>, vector<8x128xf32>,
    %c0_i32_8 = arith.constant 0 : i32
    %9 = arith.cmpi eq, %arg2, %c0_i32_8 : i32
    %10 = arith.extui %9 : i1 to i32
    %c0_i32_9 = arith.constant 0 : i32
    %11 = arith.cmpi ne, %10, %c0_i32_9 : i32
    scf.if %11 {
      %c0_10 = arith.constant 0 : index
      %c0_11 = arith.constant 0 : index
      %12 = vector.load %arg6[%c0_10, %c0_11] : memref<8x128xf32, #tpu.memory_space<vmem>>, vector<8x128xf32>
      %c0_12 = arith.constant 0 : index
      %c0_13 = arith.constant 0 : index
      %13 = vector.load %arg7[%c0_12, %c0_13] : memref<128x128xf32, #tpu.memory_space<vmem>>, vector<128x128xf32>
      %cst_14 = arith.constant dense<0.000000e+00> : vector<8x128xf32>
      %14 = tpu.matmul %12, %13, %cst_14 {dimension_numbers = #tpu.dot_dimension_numbers<[1], [0], [0], [1], [0, 0, 1, 1], [], []>} : vector<8x128xf32>, vector<128x128xf32>, vector<8x128xf32> -> vector<8x128xf32>
      %c0_15 = arith.constant 0 : index
      %c0_16 = arith.constant 0 : index
      %15 = vector.load %arg9[%c0_15, %c0_16] : memref<8x128xf32, #tpu.memory_space<vmem>>, vector<8x128xf32>
      %c0_17 = arith.constant 0 : index
      %c0_18 = arith.constant 0 : index
      %16 = vector.load %arg5[%c0_17, %c0_18] : memref<1x128xf32, #tpu.memory_space<vmem>>, vector<1x128xf32>
      %17 = vector.broadcast %16 : vector<1x128xf32> to vector<8x128xf32>
      %18 = arith.addf %15, %17 : vector<8x128xf32>
      %19 = arith.addf %18, %14 : vector<8x128xf32>
      %c0_19 = arith.constant 0 : index
      %c0_20 = arith.constant 0 : index
      %20 = vector.load %arg8[%c0_19, %c0_20] : memref<8x128xf32, #tpu.memory_space<vmem>>, vector<8x128xf32>
      tpu.vector_store %arg8[%c0_19, %c0_20], %19 {strides = array<i32>} : memref<8x128xf32, #tpu.memory_space<vmem>>, vector<8x128xf32>,
    } else {
    }
    return
  }
  func.func @transform_0(%arg0: i32, %arg1: i32, %arg2: i32) -> (i32, i32) {
    %c0_i32 = arith.constant 0 : i32
    return %arg0, %arg2 : i32, i32
  }
  func.func @transform_1(%arg0: i32, %arg1: i32, %arg2: i32) -> (i32, i32) {
    %c0_i32 = arith.constant 0 : i32
    return %arg1, %arg2 : i32, i32
  }
  func.func @transform_2(%arg0: i32, %arg1: i32, %arg2: i32) -> (i32, i32) {
    %c0_i32 = arith.constant 0 : i32
    %c0_i32_0 = arith.constant 0 : i32
    return %c0_i32, %arg1 : i32, i32
  }
  func.func @transform_3(%arg0: i32, %arg1: i32, %arg2: i32) -> (i32, i32) {
    %c0_i32 = arith.constant 0 : i32
    %c0_i32_0 = arith.constant 0 : i32
    return %arg0, %c0_i32 : i32, i32
  }
  func.func @transform_4(%arg0: i32, %arg1: i32, %arg2: i32) -> (i32, i32) {
    %c0_i32 = arith.constant 0 : i32
    %c0_i32_0 = arith.constant 0 : i32
    return %c0_i32, %arg1 : i32, i32
  }
  func.func @transform_5(%arg0: i32, %arg1: i32, %arg2: i32) -> (i32, i32) {
    %c0_i32 = arith.constant 0 : i32
    return %arg0, %arg1 : i32, i32
  }
}

</mosaic_0001>

<llo_original>
// kernel: tpu_custom_call.1
$region0: #{tpu_custom_call.1}
  #allocation0 [shape = 'u32[]', space=smem, size = 0x4, offset = 0x4, fixed_abs, tag = 'smem constant byte address 0x4 - core index']
  #allocation1 [shape = 'u32[144,128]{1,0:T(1,128)}', space=vmem, size = 0x12000, scoped, tag = 'internal scratch']
  #allocation2 [shape = 'f32[8,128]{1,0:T(8,128)}', space=vmem, size = 0x1000, scoped, tag = 'scratch operand']
  %s0 = inlined_call_operand.hbm [shape: f32[8,128], index: 0, kind: input, shape index: {}]
  %s1 = inlined_call_operand.hbm [shape: f32[128,128], index: 1, kind: input, shape index: {}]
  %s2 = inlined_call_operand.vmem [shape: f32[1,128], index: 2, kind: input, shape index: {}]
  %s3 = inlined_call_operand.hbm [shape: f32[8,128], index: 3, kind: input, shape index: {}]
  %s4 = inlined_call_operand.hbm [shape: f32[128,128], index: 4, kind: input, shape index: {}]
  %s5 = inlined_call_operand.hbm [shape: f32[8,128], index: 5, kind: output, shape index: {}]
  %s6 = sld [smem:[#allocation0]]
  $region54: #{tpu_custom_call.1} parent=0
    _
  %s8 = ssub.s32 1, %s6
  %s9 = scalar_select 0, %s8, %s6
  $region1: #{tpu_custom_call.1} parent=0
    #allocation3 [shape = 'u8[4096]{0}', space=vmem, size = 0x1000, scoped, tag = 'input window, operand 0, single buffered']
    #allocation4 [shape = 's32[1]{0}', space=sflag, size = 0x4, scoped, tag = 'scoped memory for tpu_custom_call.1']
    #allocation5 [shape = 's32[1]{0}', space=sflag, size = 0x4, scoped, tag = 'scoped memory for tpu_custom_call.1']
    #allocation6 [shape = 'u8[65536]{0}', space=vmem, size = 0x10000, scoped, tag = 'input window, operand 1, single buffered']
    #allocation7 [shape = 's32[1]{0}', space=sflag, size = 0x4, scoped, tag = 'scoped memory for tpu_custom_call.1']
    #allocation8 [shape = 'u8[4096]{0}', space=vmem, size = 0x1000, scoped, tag = 'input window, operand 3, single buffered']
    #allocation9 [shape = 'u8[65536]{0}', space=vmem, size = 0x10000, scoped, tag = 'input window, operand 4, single buffered']
    #allocation10 [shape = 's32[1]{0}', space=sflag, size = 0x4, scoped, tag = 'scoped memory for tpu_custom_call.1']
    #allocation11 [shape = 'u8[4096]{0}', space=vmem, size = 0x1000, scoped, tag = 'output window, operand 0, single buffered']
    %10 = vsyncpa [#allocation4], 0
    %11 = vsyncpa [#allocation7], 0
    %12 = vsyncpa [#allocation10], 0
    %13 = vsyncpa [#allocation5], 0
    // Predicated region
    $region2: #{tpu_custom_call.1} parent=1 // pred_check
      _
    $region3: #{tpu_custom_call.1} parent=1 // pred_check_branch
      %15 = sbr.rel (0) target = $region5
    $region4: #{tpu_custom_call.1} parent=1 // pred_region
      %s17 = ssub.s32 128, 128
      %18 = vsyncadd [#allocation4], %s17
      %s20 = sshll.u32 [#allocation3], 4
      %s21 = int_to_ptr.vmem [resolvable:$true] %s20
      %23 = dma.hbm_to_vmem [thread:$0]  %s0, 128, %s21, [#allocation4]
    $region5: #{tpu_custom_call.1} parent=1 // pred_fallthru
      _
    // Predicated region
    $region6: #{tpu_custom_call.1} parent=1 // pred_check
      _
    $region7: #{tpu_custom_call.1} parent=1 // pred_check_branch
      %25 = sbr.rel (0) target = $region9
    $region8: #{tpu_custom_call.1} parent=1 // pred_region
      %s27 = ssub.s32 2048, 2048
      %28 = vsyncadd [#allocation7], %s27
      %s29 = sshll.u32 [#allocation6], 4
      %s30 = int_to_ptr.vmem [resolvable:$true] %s29
      %35 = dma.hbm_to_vmem [thread:$0]  %s1, 2048, %s30, [#allocation7], 128, 128, 8
    $region9: #{tpu_custom_call.1} parent=1 // pred_fallthru
      _
    // Predicated region
    $region10: #{tpu_custom_call.1} parent=1 // pred_check
      _
    $region11: #{tpu_custom_call.1} parent=1 // pred_check_branch
      %37 = sbr.rel (0) target = $region13
    $region12: #{tpu_custom_call.1} parent=1 // pred_region
      _
    $region13: #{tpu_custom_call.1} parent=1 // pred_fallthru
      _
    // Predicated region
    $region14: #{tpu_custom_call.1} parent=1 // pred_check
      _
    $region15: #{tpu_custom_call.1} parent=1 // pred_check_branch
      %39 = sbr.rel (0) target = $region17
    $region16: #{tpu_custom_call.1} parent=1 // pred_region
      %s41 = ssub.s32 128, 128
      %42 = vsyncadd [#allocation7], %s41
      %s44 = sshll.u32 [#allocation8], 4
      %s45 = int_to_ptr.vmem [resolvable:$true] %s44
      %47 = dma.hbm_to_vmem [thread:$0]  %s3, 128, %s45, [#allocation7]
    $region17: #{tpu_custom_call.1} parent=1 // pred_fallthru
      _
    // Predicated region
    $region18: #{tpu_custom_call.1} parent=1 // pred_check
      _
    $region19: #{tpu_custom_call.1} parent=1 // pred_check_branch
      %49 = sbr.rel (0) target = $region21
    $region20: #{tpu_custom_call.1} parent=1 // pred_region
      %s51 = ssub.s32 2048, 2048
      %52 = vsyncadd [#allocation10], %s51
      %s53 = sshll.u32 [#allocation9], 4
      %s54 = int_to_ptr.vmem [resolvable:$true] %s53
      %59 = dma.hbm_to_vmem [thread:$0]  %s4, 2048, %s54, [#allocation10], 128, 128, 8
    $region21: #{tpu_custom_call.1} parent=1 // pred_fallthru
      _
    // Predicated region
    $region22: #{tpu_custom_call.1} parent=1 // pred_check
      _
    $region23: #{tpu_custom_call.1} parent=1 // pred_check_branch
      %61 = sbr.rel (0) target = $region25
    $region24: #{tpu_custom_call.1} parent=1 // pred_region
      %62 = dma.done [#allocation4], 128
    $region25: #{tpu_custom_call.1} parent=1 // pred_fallthru
      _
    // Predicated region
    $region26: #{tpu_custom_call.1} parent=1 // pred_check
      _
    $region27: #{tpu_custom_call.1} parent=1 // pred_check_branch
      %64 = sbr.rel (0) target = $region29
    $region28: #{tpu_custom_call.1} parent=1 // pred_region
      %65 = dma.done [#allocation7], 2048
    $region29: #{tpu_custom_call.1} parent=1 // pred_fallthru
      _
    // Predicated region
    $region30: #{tpu_custom_call.1} parent=1 // pred_check
      _
    $region31: #{tpu_custom_call.1} parent=1 // pred_check_branch
      %67 = sbr.rel (0) target = $region33
    $region32: #{tpu_custom_call.1} parent=1 // pred_region
      %68 = dma.done [#allocation7], 128
    $region33: #{tpu_custom_call.1} parent=1 // pred_fallthru
      _
    // Predicated region
    $region34: #{tpu_custom_call.1} parent=1 // pred_check
      _
    $region35: #{tpu_custom_call.1} parent=1 // pred_check_branch
      %70 = sbr.rel (0) target = $region37
    $region36: #{tpu_custom_call.1} parent=1 // pred_region
      %71 = dma.done [#allocation10], 2048
    $region37: #{tpu_custom_call.1} parent=1 // pred_fallthru
      _
    %p72 = scmp.eq.s32.totalorder 0, 0
    // Predicated region
    $region38: #{tpu_custom_call.1} parent=1 // pred_check
      %p73 = pneg %p72
    $region39: #{tpu_custom_call.1} parent=1 // pred_check_branch
      %75 = sbr.rel (%p73) target = $region41
    $region40: #{tpu_custom_call.1} parent=1 // pred_region
      %76 = vst [vmem:[#allocation2] sm:$0xff] 0.0
    $region41: #{tpu_custom_call.1} parent=1 // pred_fallthru
      _
    %v77 = vld [vmem:[#allocation2] sm:$0xff]
    %v78 = vld [vmem:[#allocation3] sm:$0xff]
    %v79 = vld [vmem:[#allocation6] sm:$0xff]
    %v80 = vld [vmem:[#allocation6 + $0x8] sm:$0xff]
    %v81 = vld [vmem:[#allocation6 + $0x10] sm:$0xff]
    %v82 = vld [vmem:[#allocation6 + $0x18] sm:$0xff]
    %v83 = vld [vmem:[#allocation6 + $0x20] sm:$0xff]
    %v84 = vld [vmem:[#allocation6 + $0x28] sm:$0xff]
    %v85 = vld [vmem:[#allocation6 + $0x30] sm:$0xff]
    %v86 = vld [vmem:[#allocation6 + $0x38] sm:$0xff]
    %v87 = vld [vmem:[#allocation6 + $0x40] sm:$0xff]
    %v88 = vld [vmem:[#allocation6 + $0x48] sm:$0xff]
    %v89 = vld [vmem:[#allocation6 + $0x50] sm:$0xff]
    %v90 = vld [vmem:[#allocation6 + $0x58] sm:$0xff]
    %v91 = vld [vmem:[#allocation6 + $0x60] sm:$0xff]
    %v92 = vld [vmem:[#allocation6 + $0x68] sm:$0xff]
    %v93 = vld [vmem:[#allocation6 + $0x70] sm:$0xff]
    %v94 = vld [vmem:[#allocation6 + $0x78] sm:$0xff]
    %95 = vmatprep.subr.mxu0 0.0
    %96 = vmatpush1.xpose.msra.mxu0 %v94
    %97 = vmatprep.subr.mxu0 0.0
    %98 = vmatpush1.xpose.msra.mxu0 %v93
    %99 = vmatprep.subr.mxu0 0.0
    %100 = vmatpush1.xpose.msra.mxu0 %v92
    %101 = vmatprep.subr.mxu0 0.0
    %102 = vmatpush1.xpose.msra.mxu0 %v91
    %103 = vmatprep.subr.mxu0 0.0
    %104 = vmatpush1.xpose.msra.mxu0 %v90
    %105 = vmatprep.subr.mxu0 0.0
    %106 = vmatpush1.xpose.msra.mxu0 %v89
    %107 = vmatprep.subr.mxu0 0.0
    %108 = vmatpush1.xpose.msra.mxu0 %v88
    %109 = vmatprep.subr.mxu0 0.0
    %110 = vmatpush1.xpose.msra.mxu0 %v87
    %111 = vmatprep.subr.mxu0 0.0
    %112 = vmatpush1.xpose.msra.mxu0 %v86
    %113 = vmatprep.subr.mxu0 0.0
    %114 = vmatpush1.xpose.msra.mxu0 %v85
    %115 = vmatprep.subr.mxu0 0.0
    %116 = vmatpush1.xpose.msra.mxu0 %v84
    %117 = vmatprep.subr.mxu0 0.0
    %118 = vmatpush1.xpose.msra.mxu0 %v83
    %119 = vmatprep.subr.mxu0 0.0
    %120 = vmatpush1.xpose.msra.mxu0 %v82
    %121 = vmatprep.subr.mxu0 0.0
    %122 = vmatpush1.xpose.msra.mxu0 %v81
    %123 = vmatprep.subr.mxu0 0.0
    %124 = vmatpush1.xpose.msra.mxu0 %v80
    %125 = vmatprep.subr.mxu0 0.0
    %126 = vmatpush1.xpose.msra.mxu0 %v79
    %127 = vmatprep.subr.mxu0 0.0
    %128 = vmatpush2.xpose.msra.mxu0 0.0
    %129 = vmatprep.subr.mxu0 0.0
    %130 = vmatpush2.xpose.msra.mxu0 0.0
    %131 = vmatprep.subr.mxu0 0.0
    %132 = vmatpush2.xpose.msra.mxu0 0.0
    %133 = vmatprep.subr.mxu0 0.0
    %134 = vmatpush2.xpose.msra.mxu0 0.0
    %135 = vmatprep.subr.mxu0 0.0
    %136 = vmatpush2.xpose.msra.mxu0 0.0
    %137 = vmatprep.subr.mxu0 0.0
    %138 = vmatpush2.xpose.msra.mxu0 0.0
    %139 = vmatprep.subr.mxu0 0.0
    %140 = vmatpush2.xpose.msra.mxu0 0.0
    %141 = vmatprep.subr.mxu0 0.0
    %142 = vmatpush2.xpose.msra.mxu0 0.0
    %143 = vmatprep.subr.mxu0 0.0
    %144 = vmatpush2.xpose.msra.mxu0 0.0
    %145 = vmatprep.subr.mxu0 0.0
    %146 = vmatpush2.xpose.msra.mxu0 0.0
    %147 = vmatprep.subr.mxu0 0.0
    %148 = vmatpush2.xpose.msra.mxu0 0.0
    %149 = vmatprep.subr.mxu0 0.0
    %150 = vmatpush2.xpose.msra.mxu0 0.0
    %151 = vmatprep.subr.mxu0 0.0
    %152 = vmatpush2.xpose.msra.mxu0 0.0
    %153 = vmatprep.subr.mxu0 0.0
    %154 = vmatpush2.xpose.msra.mxu0 0.0
    %155 = vmatprep.subr.mxu0 0.0
    %156 = vmatpush2.xpose.msra.mxu0 0.0
    %157 = vmatprep.subr.mxu0 0.0
    %158 = vmatpush2.xpose.msra.mxu0 0.0
    %159 = vmatprep.mubr.f32.mxu0 0.0
    %160 = vmatmul.mubr.f32.gmra.mxu0 %v78
    %v161 = vpop.f32.mrf.mxu0
    %v162 = vadd.f32 0.0, %v161
    %v163 = vpop.f32.mrf.mxu0
    %164 = vdwg.mxu0
    %v165 = vadd.f32 %v77, %v162
    %166 = vst [vmem:[#allocation2] sm:$0xff] %v165
    // Predicated region
    $region42: #{tpu_custom_call.1} parent=1 // pred_check
      %p167 = pneg %p72
    $region43: #{tpu_custom_call.1} parent=1 // pred_check_branch
      %169 = sbr.rel (%p167) target = $region45
    $region44: #{tpu_custom_call.1} parent=1 // pred_region
      %v170 = vld [vmem:[#allocation8] sm:$0xff]
      %v171 = vld [vmem:[#allocation9] sm:$0xff]
      %v172 = vld [vmem:[#allocation9 + $0x8] sm:$0xff]
      %v173 = vld [vmem:[#allocation9 + $0x10] sm:$0xff]
      %v174 = vld [vmem:[#allocation9 + $0x18] sm:$0xff]
      %v175 = vld [vmem:[#allocation9 + $0x20] sm:$0xff]
      %v176 = vld [vmem:[#allocation9 + $0x28] sm:$0xff]
      %v177 = vld [vmem:[#allocation9 + $0x30] sm:$0xff]
      %v178 = vld [vmem:[#allocation9 + $0x38] sm:$0xff]
      %v179 = vld [vmem:[#allocation9 + $0x40] sm:$0xff]
      %v180 = vld [vmem:[#allocation9 + $0x48] sm:$0xff]
      %v181 = vld [vmem:[#allocation9 + $0x50] sm:$0xff]
      %v182 = vld [vmem:[#allocation9 + $0x58] sm:$0xff]
      %v183 = vld [vmem:[#allocation9 + $0x60] sm:$0xff]
      %v184 = vld [vmem:[#allocation9 + $0x68] sm:$0xff]
      %v185 = vld [vmem:[#allocation9 + $0x70] sm:$0xff]
      %v186 = vld [vmem:[#allocation9 + $0x78] sm:$0xff]
      %187 = vmatprep.subr.mxu0 0.0
      %188 = vmatpush1.msra.mxu0 %v186
      %189 = vmatprep.subr.mxu0 0.0
      %190 = vmatpush1.msra.mxu0 %v185
      %191 = vmatprep.subr.mxu0 0.0
      %192 = vmatpush1.msra.mxu0 %v184
      %193 = vmatprep.subr.mxu0 0.0
      %194 = vmatpush1.msra.mxu0 %v183
      %195 = vmatprep.subr.mxu0 0.0
      %196 = vmatpush1.msra.mxu0 %v182
      %197 = vmatprep.subr.mxu0 0.0
      %198 = vmatpush1.msra.mxu0 %v181
      %199 = vmatprep.subr.mxu0 0.0
      %200 = vmatpush1.msra.mxu0 %v180
      %201 = vmatprep.subr.mxu0 0.0
      %202 = vmatpush1.msra.mxu0 %v179
      %203 = vmatprep.subr.mxu0 0.0
      %204 = vmatpush1.msra.mxu0 %v178
      %205 = vmatprep.subr.mxu0 0.0
      %206 = vmatpush1.msra.mxu0 %v177
      %207 = vmatprep.subr.mxu0 0.0
      %208 = vmatpush1.msra.mxu0 %v176
      %209 = vmatprep.subr.mxu0 0.0
      %210 = vmatpush1.msra.mxu0 %v175
      %211 = vmatprep.subr.mxu0 0.0
      %212 = vmatpush1.msra.mxu0 %v174
      %213 = vmatprep.subr.mxu0 0.0
      %214 = vmatpush1.msra.mxu0 %v173
      %215 = vmatprep.subr.mxu0 0.0
      %216 = vmatpush1.msra.mxu0 %v172
      %217 = vmatprep.subr.mxu0 0.0
      %218 = vmatpush1.msra.mxu0 %v171
      %219 = vmatprep.subr.mxu0 0.0
      %220 = vmatpush2.msra.mxu0 0.0
      %221 = vmatprep.subr.mxu0 0.0
      %222 = vmatpush2.msra.mxu0 0.0
      %223 = vmatprep.subr.mxu0 0.0
      %224 = vmatpush2.msra.mxu0 0.0
      %225 = vmatprep.subr.mxu0 0.0
      %226 = vmatpush2.msra.mxu0 0.0
      %227 = vmatprep.subr.mxu0 0.0
      %228 = vmatpush2.msra.mxu0 0.0
      %229 = vmatprep.subr.mxu0 0.0
      %230 = vmatpush2.msra.mxu0 0.0
      %231 = vmatprep.subr.mxu0 0.0
      %232 = vmatpush2.msra.mxu0 0.0
      %233 = vmatprep.subr.mxu0 0.0
      %234 = vmatpush2.msra.mxu0 0.0
      %235 = vmatprep.subr.mxu0 0.0
      %236 = vmatpush2.msra.mxu0 0.0
      %237 = vmatprep.subr.mxu0 0.0
      %238 = vmatpush2.msra.mxu0 0.0
      %239 = vmatprep.subr.mxu0 0.0
      %240 = vmatpush2.msra.mxu0 0.0
      %241 = vmatprep.subr.mxu0 0.0
      %242 = vmatpush2.msra.mxu0 0.0
      %243 = vmatprep.subr.mxu0 0.0
      %244 = vmatpush2.msra.mxu0 0.0
      %245 = vmatprep.subr.mxu0 0.0
      %246 = vmatpush2.msra.mxu0 0.0
      %247 = vmatprep.subr.mxu0 0.0
      %248 = vmatpush2.msra.mxu0 0.0
      %249 = vmatprep.subr.mxu0 0.0
      %250 = vmatpush2.msra.mxu0 0.0
      %251 = vmatprep.mubr.f32.mxu0 0.0
      %252 = vmatmul.mubr.f32.gmra.mxu0 %v170
      %v253 = vpop.f32.mrf.mxu0
      %v254 = vadd.f32 0.0, %v253
      %v255 = vpop.f32.mrf.mxu0
      %256 = vdwg.mxu0
      %v257 = vld [vmem:[#allocation2] sm:$0xff]
      %v258 = vld [vmem:[%s2] sm:$0x1]
      %v260 = vlaneseq
      %v261 = vshrl.u32 %v260, 7
      %v262 = vsub.s32 0, %v261
      %v263 = vrot.slane %v258, %v262
      %v265 = vadd.f32 %v257, %v263
      %v266 = vadd.f32 %v265, %v254
      %267 = vst [vmem:[#allocation11] sm:$0xff] %v266
    $region45: #{tpu_custom_call.1} parent=1 // pred_fallthru
      _
    // Predicated region
    $region46: #{tpu_custom_call.1} parent=1 // pred_check
      _
    $region47: #{tpu_custom_call.1} parent=1 // pred_check_branch
      %269 = sbr.rel (0) target = $region49
    $region48: #{tpu_custom_call.1} parent=1 // pred_region
      %s271 = ssub.s32 128, 128
      %272 = vsyncadd [#allocation5], %s271
      %s274 = sshll.u32 [#allocation11], 4
      %s275 = int_to_ptr.vmem [resolvable:$true] %s274
      %277 = dma.vmem_to_hbm [thread:$0]  %s275, 128, %s5, [#allocation5]
    $region49: #{tpu_custom_call.1} parent=1 // pred_fallthru
      _
    // Predicated region
    $region50: #{tpu_custom_call.1} parent=1 // pred_check
      _
    $region51: #{tpu_custom_call.1} parent=1 // pred_check_branch
      %279 = sbr.rel (0) target = $region53
    $region52: #{tpu_custom_call.1} parent=1 // pred_region
      %280 = dma.done [#allocation5], 128
    $region53: #{tpu_custom_call.1} parent=1 // pred_fallthru
      _
    %281 = vsyncpa [#allocation4], 1
    %282 = vsyncpa [#allocation7], 1
    %283 = vsyncpa [#allocation10], 1
    %284 = vsyncpa [#allocation5], 1

</llo_original>
